<compile_context>
chip_gen: v7x
topology: tpu7x:2x2x1
jax: 0.10.0
libtpu: 0.0.40
codegen_flags: <defaults>
</compile_context>

<pallas_src>
import jax
import jax.numpy as jnp
import numpy as np
from jax.experimental import pallas as pl
from jax.experimental.pallas import tpu as pltpu

EPS = 1e-6
_TARGET_TILE_BYTES = 2 * 1024 * 1024  # ~2 MiB input row tiles (safe on 64 MiB v7x VMEM)

# Fixed, non-trainable conv weights of the original module (reference only).
KERNEL_V = np.array([[0., -1., 0.],
                     [0.,  0., 0.],
                     [0.,  1., 0.]], dtype=np.float32)
KERNEL_H = np.array([[ 0., 0., 0.],
                     [-1., 0., 1.],
                     [ 0., 0., 0.]], dtype=np.float32)


def _stencil(xpad_ref, o_ref, rows_out, w):
    """Write sqrt(v^2 + h^2 + eps) for `rows_out` output rows.

    xpad_ref[t, c] == x[row0 - 2 + t, c - 2] inside the valid range and 0
    outside it, where row0 is the first output row produced by this call.
      xpad_ref : (rows_out + 2, w + 4) VMEM scratch
      o_ref    : (rows_out,     w + 2) output block
    """
    a = xpad_ref[2:rows_out + 2, 1:w + 3]   # x[i,   j-1]
    b = xpad_ref[0:rows_out,     1:w + 3]   # x[i-2, j-1]
    c = xpad_ref[1:rows_out + 1, 2:w + 4]   # x[i-1, j  ]
    d = xpad_ref[1:rows_out + 1, 0:w + 2]   # x[i-1, j-2]
    v = a - b
    h = c - d
    o_ref[...] = jnp.sqrt(v * v + h * h + EPS)


def _grad_kernel_tiled(body_ref, halo_ref, o_ref, xpad_ref):
    """Row-tiled kernel.  Grid = (N, C, H//TR + 1).

    body_ref : (TR, W)     input rows [r*TR, r*TR + TR) (index clamped on last step)
    halo_ref : (8,  W)     8-row block whose rows 6:8 are x[r*TR - 2 : r*TR]
    o_ref    : (TR, W + 2) output rows [r*TR, r*TR + TR)
    xpad_ref : (TR + 2, W + 4) zero-bordered padded tile (VMEM scratch)
    """
    tr, w = body_ref.shape
    r = pl.program_id(2)
    last = pl.num_programs(2) - 1
    dt = xpad_ref.dtype

    # Zero the 2-column left/right borders (cheap thin strips).
    zc = jnp.zeros((tr + 2, 2), dt)
    xpad_ref[:, 0:2] = zc
    xpad_ref[:, w + 2:w + 4] = zc

    # Two halo rows above this tile (zeros for the first row tile).
    xpad_ref[0:2, 2:w + 2] = halo_ref[6:8, :]

    @pl.when(r == 0)
    def _():
        xpad_ref[0:2, 2:w + 2] = jnp.zeros((2, w), dt)

    # Body rows x[r*TR : r*TR + TR].
    xpad_ref[2:tr + 2, 2:w + 2] = body_ref[...]

    # The extra last step only produces output rows H and H+1; the input rows
    # below the image are zero.  Only xpad rows 2:4 feed those two valid
    # output rows, so zeroing them is sufficient (the rest of the block is
    # dropped on writeback of the partial output block).
    @pl.when(r == last)
    def _():
        xpad_ref[2:4, 2:w + 2] = jnp.zeros((2, w), dt)

    _stencil(xpad_ref, o_ref, tr, w)


def _grad_kernel_whole(x_ref, o_ref, xpad_ref):
    """Fallback kernel (whole image per (n, c)).  Grid = (N, C)."""
    h, w = x_ref.shape
    dt = xpad_ref.dtype
    zc = jnp.zeros((h + 4, 2), dt)
    zr = jnp.zeros((2, w), dt)
    xpad_ref[:, 0:2] = zc
    xpad_ref[:, w + 2:w + 4] = zc
    xpad_ref[0:2, 2:w + 2] = zr
    xpad_ref[h + 2:h + 4, 2:w + 2] = zr
    xpad_ref[2:h + 2, 2:w + 2] = x_ref[...]
    _stencil(xpad_ref, o_ref, h + 2, w)


def _pick_row_tile(h, w, target_bytes):
    """Largest multiple of 8 dividing h whose (rows x w) f32 tile fits target."""
    if h % 8 != 0:
        return None
    target_rows = max(8, target_bytes // (4 * w))
    best = 8
    t = 8
    while t <= h:
        if h % t == 0 and t <= target_rows:
            best = t
        t += 8
    return best


def get_gradient(x, *, target_block_bytes=_TARGET_TILE_BYTES):
    """Pallas equivalent of Get_gradient.forward.  x: (N, 3, H, W) float32."""
    n, c, h, w = x.shape
    assert c == 3, "Get_gradient expects 3 input channels"
    ho, wo = h + 2, w + 2
    out_shape = jax.ShapeDtypeStruct((n, c, ho, wo), x.dtype)

    tr = _pick_row_tile(h, w, target_block_bytes)
    if tr is None:
        # TODO(synk): add a masked row-tiled path for H % 8 != 0 so very tall
        # odd-height images do not fall back to whole-image VMEM blocks.
        return pl.pallas_call(
            _grad_kernel_whole,
            out_shape=out_shape,
            grid=(n, c),
            in_specs=[pl.BlockSpec((None, None, h, w), lambda i, j: (i, j, 0, 0))],
            out_specs=pl.BlockSpec((None, None, ho, wo), lambda i, j: (i, j, 0, 0)),
            scratch_shapes=[pltpu.VMEM((h + 4, w + 4), x.dtype)],
            compiler_params=pltpu.CompilerParams(
                dimension_semantics=("parallel", "parallel")),
        )(x)

    r_in = h // tr              # number of real input row tiles
    grid = (n, c, r_in + 1)     # one extra step for output rows H, H+1

    def body_map(i, j, r):
        return (i, j, jnp.minimum(r, r_in - 1), 0)

    def halo_map(i, j, r):
        # 8-row block ending exactly at input row r*tr; block rows 6:8 are the
        # 2-row halo x[r*tr - 2 : r*tr].  Clamped at r == 0 (zeroed in-kernel).
        return (i, j, jnp.maximum(r * (tr // 8) - 1, 0), 0)

    def out_map(i, j, r):
        return (i, j, r, 0)

    return pl.pallas_call(
        _grad_kernel_tiled,
        out_shape=out_shape,
        grid=grid,
        in_specs=[pl.BlockSpec((None, None, tr, w), body_map),
                  pl.BlockSpec((None, None, 8, w), halo_map)],
        out_specs=pl.BlockSpec((None, None, tr, wo), out_map),
        scratch_shapes=[pltpu.VMEM((tr + 2, w + 4), x.dtype)],
        compiler_params=pltpu.CompilerParams(
            dimension_semantics=("parallel", "parallel", "parallel")),
    )(x, x)


def _reference(x):
    """Exact shifted-difference reference (same float ops as the kernel)."""
    _, _, h, w = x.shape
    xp = jnp.pad(x, ((0, 0), (0, 0), (2, 2), (2, 2)))
    v = xp[:, :, 2:h + 4, 1:w + 3] - xp[:, :, 0:h + 2, 1:w + 3]
    hh = xp[:, :, 1:h + 3, 2:w + 4] - xp[:, :, 1:h + 3, 0:w + 2]
    return jnp.sqrt(v * v + hh * hh + EPS)


def _reference_conv(x):
    """Conv-based reference matching the PyTorch module literally."""
    wv = jnp.asarray(KERNEL_V)[None, None]
    wh = jnp.asarray(KERNEL_H)[None, None]

    def conv1(ch, wgt):
        return jax.lax.conv_general_dilated(
            ch[:, None], wgt, window_strides=(1, 1), padding=((2, 2), (2, 2)),
            dimension_numbers=("NCHW", "OIHW", "NCHW"),
            precision=jax.lax.Precision.HIGHEST)

    outs = []
    for ci in range(3):
        v = conv1(x[:, ci], wv)
        h = conv1(x[:, ci], wh)
        outs.append(jnp.sqrt(v * v + h * h + EPS))
    return jnp.concatenate(outs, axis=1)


if __name__ == "__main__":
    key = jax.random.PRNGKey(0)
    k1, k2, k3 = jax.random.split(key, 3)

    # Primary shape (module requires 3 input channels).
    x1 = jax.random.normal(k1, (2, 3, 16, 16), dtype=jnp.float32)
    out1 = jax.block_until_ready(get_gradient(x1))
    assert out1.shape == (2, 3, 18, 18), out1.shape
    np.testing.assert_allclose(np.asarray(out1), np.asarray(_reference(x1)),
                               rtol=1e-5, atol=1e-5)
    np.testing.assert_allclose(np.asarray(out1), np.asarray(_reference_conv(x1)),
                               rtol=1e-4, atol=1e-4)

    # Multi-row-tile path: force 8-row tiles -> grid (1, 3, 5) with halo + extra step.
    x2 = jax.random.normal(k2, (1, 3, 32, 40), dtype=jnp.float32)
    out2 = jax.block_until_ready(get_gradient(x2, target_block_bytes=8 * 4 * 40))
    np.testing.assert_allclose(np.asarray(out2), np.asarray(_reference(x2)),
                               rtol=1e-5, atol=1e-5)

    # Whole-image fallback (H not a multiple of 8).
    x3 = jax.random.normal(k3, (1, 3, 10, 12), dtype=jnp.float32)
    out3 = jax.block_until_ready(get_gradient(x3))
    np.testing.assert_allclose(np.asarray(out3), np.asarray(_reference(x3)),
                               rtol=1e-5, atol=1e-5)

    print("KERNEL_OK")
</pallas_src>

<mosaic_0001>
module attributes {stable_mosaic.version = 11 : i64} {
  func.func @_grad_kernel_tiled(%arg0: i32, %arg1: i32, %arg2: i32, %arg3: memref<1x1x16x16xf32, #tpu.memory_space<vmem>>, %arg4: memref<1x1x8x16xf32, #tpu.memory_space<vmem>>, %arg5: memref<1x1x16x18xf32, #tpu.memory_space<vmem>>, %arg6: memref<18x20xf32, #tpu.memory_space<vmem>>) attributes {dimension_semantics = [#tpu.dimension_semantics<parallel>, #tpu.dimension_semantics<parallel>, #tpu.dimension_semantics<parallel>], iteration_bounds = array<i64: 2, 3, 2>, scalar_prefetch = 0 : i64, scratch_operands = 1 : i64, tpu.core_type = #tpu.core_type<tc>, window_params = [{transform_indices = @transform_0, window_bounds = array<i64: 1, 1, 16, 16>}, {transform_indices = @transform_1, window_bounds = array<i64: 1, 1, 8, 16>}, {transform_indices = @transform_2, window_bounds = array<i64: 1, 1, 16, 18>}]} {
    %cst = arith.constant 0.000000e+00 : f32
    %0 = vector.broadcast %cst : f32 to vector<18x2xf32>
    %c0 = arith.constant 0 : index
    %c0_0 = arith.constant 0 : index
    %1 = vector.load %arg6[%c0, %c0_0] : memref<18x20xf32, #tpu.memory_space<vmem>>, vector<18x2xf32>
    tpu.vector_store %arg6[%c0, %c0_0], %0 {strides = array<i32>} : memref<18x20xf32, #tpu.memory_space<vmem>>, vector<18x2xf32>,
    %c0_1 = arith.constant 0 : index
    %c18 = arith.constant 18 : index
    %2 = vector.load %arg6[%c0_1, %c18] : memref<18x20xf32, #tpu.memory_space<vmem>>, vector<18x2xf32>
    tpu.vector_store %arg6[%c0_1, %c18], %0 {strides = array<i32>} : memref<18x20xf32, #tpu.memory_space<vmem>>, vector<18x2xf32>,
    %c0_2 = arith.constant 0 : index
    %c0_3 = arith.constant 0 : index
    %c6 = arith.constant 6 : index
    %c0_4 = arith.constant 0 : index
    %3 = vector.load %arg4[%c0_2, %c0_3, %c6, %c0_4] : memref<1x1x8x16xf32, #tpu.memory_space<vmem>>, vector<1x1x2x16xf32>
    %4 = vector.shape_cast %3 : vector<1x1x2x16xf32> to vector<2x16xf32>
    %c0_5 = arith.constant 0 : index
    %c2 = arith.constant 2 : index
    %5 = vector.load %arg6[%c0_5, %c2] : memref<18x20xf32, #tpu.memory_space<vmem>>, vector<2x16xf32>
    tpu.vector_store %arg6[%c0_5, %c2], %4 {strides = array<i32>} : memref<18x20xf32, #tpu.memory_space<vmem>>, vector<2x16xf32>,
    %c0_i32 = arith.constant 0 : i32
    %6 = arith.cmpi eq, %arg2, %c0_i32 : i32
    %7 = arith.extui %6 : i1 to i32
    %c0_i32_6 = arith.constant 0 : i32
    %8 = arith.cmpi ne, %7, %c0_i32_6 : i32
    scf.if %8 {
      %cst_26 = arith.constant 0.000000e+00 : f32
      %30 = vector.broadcast %cst_26 : f32 to vector<2x16xf32>
      %c0_27 = arith.constant 0 : index
      %c2_28 = arith.constant 2 : index
      %31 = vector.load %arg6[%c0_27, %c2_28] : memref<18x20xf32, #tpu.memory_space<vmem>>, vector<2x16xf32>
      tpu.vector_store %arg6[%c0_27, %c2_28], %30 {strides = array<i32>} : memref<18x20xf32, #tpu.memory_space<vmem>>, vector<2x16xf32>,
    } else {
    }
    %c0_7 = arith.constant 0 : index
    %c0_8 = arith.constant 0 : index
    %c0_9 = arith.constant 0 : index
    %c0_10 = arith.constant 0 : index
    %9 = vector.load %arg3[%c0_7, %c0_8, %c0_9, %c0_10] : memref<1x1x16x16xf32, #tpu.memory_space<vmem>>, vector<1x1x16x16xf32>
    %10 = vector.shape_cast %9 : vector<1x1x16x16xf32> to vector<16x16xf32>
    %c2_11 = arith.constant 2 : index
    %c2_12 = arith.constant 2 : index
    %11 = vector.load %arg6[%c2_11, %c2_12] : memref<18x20xf32, #tpu.memory_space<vmem>>, vector<16x16xf32>
    tpu.vector_store %arg6[%c2_11, %c2_12], %10 {strides = array<i32>} : memref<18x20xf32, #tpu.memory_space<vmem>>, vector<16x16xf32>,
    %c1_i32 = arith.constant 1 : i32
    %12 = arith.cmpi eq, %arg2, %c1_i32 : i32
    %13 = arith.extui %12 : i1 to i32
    %c0_i32_13 = arith.constant 0 : i32
    %14 = arith.cmpi ne, %13, %c0_i32_13 : i32
    scf.if %14 {
      %cst_26 = arith.constant 0.000000e+00 : f32
      %30 = vector.broadcast %cst_26 : f32 to vector<2x16xf32>
      %c2_27 = arith.constant 2 : index
      %c2_28 = arith.constant 2 : index
      %31 = vector.load %arg6[%c2_27, %c2_28] : memref<18x20xf32, #tpu.memory_space<vmem>>, vector<2x16xf32>
      tpu.vector_store %arg6[%c2_27, %c2_28], %30 {strides = array<i32>} : memref<18x20xf32, #tpu.memory_space<vmem>>, vector<2x16xf32>,
    } else {
    }
    %c2_14 = arith.constant 2 : index
    %c1 = arith.constant 1 : index
    %15 = vector.load %arg6[%c2_14, %c1] : memref<18x20xf32, #tpu.memory_space<vmem>>, vector<16x18xf32>
    %c0_15 = arith.constant 0 : index
    %c1_16 = arith.constant 1 : index
    %16 = vector.load %arg6[%c0_15, %c1_16] : memref<18x20xf32, #tpu.memory_space<vmem>>, vector<16x18xf32>
    %c1_17 = arith.constant 1 : index
    %c2_18 = arith.constant 2 : index
    %17 = vector.load %arg6[%c1_17, %c2_18] : memref<18x20xf32, #tpu.memory_space<vmem>>, vector<16x18xf32>
    %c1_19 = arith.constant 1 : index
    %c0_20 = arith.constant 0 : index
    %18 = vector.load %arg6[%c1_19, %c0_20] : memref<18x20xf32, #tpu.memory_space<vmem>>, vector<16x18xf32>
    %19 = arith.subf %15, %16 : vector<16x18xf32>
    %20 = arith.subf %17, %18 : vector<16x18xf32>
    %21 = arith.mulf %19, %19 : vector<16x18xf32>
    %22 = arith.mulf %20, %20 : vector<16x18xf32>
    %23 = arith.addf %21, %22 : vector<16x18xf32>
    %cst_21 = arith.constant 9.99999997E-7 : f32
    %24 = vector.broadcast %cst_21 : f32 to vector<16x18xf32>
    %25 = arith.addf %23, %24 : vector<16x18xf32>
    %26 = math.sqrt %25 : vector<16x18xf32>
    %c0_22 = arith.constant 0 : index
    %c0_23 = arith.constant 0 : index
    %c0_24 = arith.constant 0 : index
    %c0_25 = arith.constant 0 : index
    %27 = vector.load %arg5[%c0_22, %c0_23, %c0_24, %c0_25] : memref<1x1x16x18xf32, #tpu.memory_space<vmem>>, vector<1x1x16x18xf32>
    %28 = vector.shape_cast %27 : vector<1x1x16x18xf32> to vector<16x18xf32>
    %29 = vector.shape_cast %26 : vector<16x18xf32> to vector<1x1x16x18xf32>
    tpu.vector_store %arg5[%c0_22, %c0_23, %c0_24, %c0_25], %29 {strides = array<i32>} : memref<1x1x16x18xf32, #tpu.memory_space<vmem>>, vector<1x1x16x18xf32>,
    return
  }
  func.func @transform_0(%arg0: i32, %arg1: i32, %arg2: i32) -> (i32, i32, i32, i32) {
    %c0_i32 = arith.constant 0 : i32
    %0 = arith.minsi %arg2, %c0_i32 : i32
    %c0_i32_0 = arith.constant 0 : i32
    %c0_i32_1 = arith.constant 0 : i32
    return %arg0, %arg1, %0, %c0_i32_0 : i32, i32, i32, i32
  }
  func.func @transform_1(%arg0: i32, %arg1: i32, %arg2: i32) -> (i32, i32, i32, i32) {
    %c2_i32 = arith.constant 2 : i32
    %0 = arith.muli %arg2, %c2_i32 : i32
    %c1_i32 = arith.constant 1 : i32
    %1 = arith.subi %0, %c1_i32 : i32
    %c0_i32 = arith.constant 0 : i32
    %2 = arith.maxsi %1, %c0_i32 : i32
    %c0_i32_0 = arith.constant 0 : i32
    %c0_i32_1 = arith.constant 0 : i32
    return %arg0, %arg1, %2, %c0_i32_0 : i32, i32, i32, i32
  }
  func.func @transform_2(%arg0: i32, %arg1: i32, %arg2: i32) -> (i32, i32, i32, i32) {
    %c0_i32 = arith.constant 0 : i32
    %c0_i32_0 = arith.constant 0 : i32
    return %arg0, %arg1, %arg2, %c0_i32 : i32, i32, i32, i32
  }
}

</mosaic_0001>

<llo_original>
// kernel: tpu_custom_call.1
$region0: #{tpu_custom_call.1}
  #allocation0 [shape = 'u32[]', space=smem, size = 0x4, offset = 0x4, fixed_abs, tag = 'smem constant byte address 0x4 - core index']
  #allocation1 [shape = 'u32[144,128]{1,0:T(1,128)}', space=vmem, size = 0x12000, scoped, tag = 'internal scratch']
  #allocation2 [shape = 'f32[18,20]{1,0:T(8,128)}', space=vmem, size = 0x3000, scoped, tag = 'scratch operand']
  %s0 = inlined_call_operand.hbm [shape: f32[2,3,16,16], index: 0, kind: input, shape index: {}]
  %s1 = inlined_call_operand.hbm [shape: f32[2,3,16,16], index: 1, kind: input, shape index: {}]
  %s2 = inlined_call_operand.vmem [shape: f32[2,3,18,18], index: 2, kind: output, shape index: {}]
  %s3 = sld [smem:[#allocation0]]
  $region105: #{tpu_custom_call.1} parent=0
    _
  %s5 = ssub.s32 1, %s3
  %s6 = scalar_select 0, %s5, %s3
  $region1: #{tpu_custom_call.1} parent=0
    #allocation3 [shape = 'u8[16384]{0}', space=vmem, size = 0x4000, scoped, tag = 'input window, operand 0']
    #allocation4 [shape = 's32[2]{0}', space=sflag, size = 0x8, scoped, tag = 'scoped memory for tpu_custom_call.1']
    #allocation5 [shape = 'u8[8192]{0}', space=vmem, size = 0x2000, scoped, tag = 'input window, operand 1']
    #allocation6 [shape = 's32[2]{0}', space=sflag, size = 0x8, scoped, tag = 'scoped memory for tpu_custom_call.1']
    #allocation7 [shape = 'u8[16384]{0}', space=vmem, size = 0x4000, scoped, tag = 'output window, operand 0']
    %7 = vsyncpa [#allocation4], 0
    %s8 = scalar_lea.sflag [#allocation4], 1
    %9 = vsyncpa %s8, 0
    %10 = vsyncpa [#allocation6], 0
    %s11 = scalar_lea.sflag [#allocation6], 1
    %12 = vsyncpa %s11, 0
    loop: start=0, step=1, limit=14
    $region2: #{tpu_custom_call.1} parent=1 // loop_pre_header
      _
    $region3: #{tpu_custom_call.1} parent=1 // loop_header
      %s14 = sphi 0, %s18
      %p15 = scmp.ge.s32.totalorder %s14, 14
      %s21 = sphi 0, %s40
      %s22 = sphi 0, %s36
      %s23 = sphi 0, %s32
      %s24 = sphi 0, %s21
      %s25 = sphi 0, %s22
      %s26 = sphi 0, %s23
      %s27 = sphi 0, %s24
      %s28 = sphi 0, %s25
      %s29 = sphi 0, %s26
      %s51 = sphi 0, %s53
      %s54 = sphi 0, %s51
      %s55 = sphi 0, %s54
      %s71 = sphi 0, %s55
      %s89 = sphi 0, %s91
      %s92 = sphi 0, %s89
      %s93 = sphi 0, %s92
      %s109 = sphi 0, %s93
      %s119 = sphi 0, %s121
      %s122 = sphi 0, %s119
      %s123 = sphi 0, %s122
      %s139 = sphi 0, %s123
    $region4: #{tpu_custom_call.1} parent=1 // loop_header_branch
      %17 = sbr.rel (%p15) target = $region8
    $region5: #{tpu_custom_call.1} parent=1 // loop_body
      %s19 = ssub.s32 %s14, 1
      %s20 = ssub.s32 %s14, 2
      %s30 = sadd.s32 1, %s23
      %p31 = scmp.ge.s32.totalorder %s30, 2
      %s32 = scalar_select %p31, 0, %s30
      %s33 = sadd.s32 1, %s22
      %s34 = scalar_select %p31, %s33, %s22
      %p35 = scmp.ge.s32.totalorder %s34, 3
      %s36 = scalar_select %p35, 0, %s34
      %s37 = sadd.s32 1, %s21
      %s38 = scalar_select %p35, %s37, %s21
      %p39 = scmp.ge.s32.totalorder %s38, 2
      %s40 = scalar_select %p39, 0, %s38
      %p41 = scmp.lt.s32.totalorder %s23, 0
      %s42 = scalar_select %p41, %s23, 0
      %p43 = scmp.lt.s32.totalorder %s32, 0
      %s44 = scalar_select %p43, %s32, 0
      %s45 = ssub.s32 %s21, %s40
      %s46 = ssub.s32 %s22, %s36
      %s47 = sor.u32 %s45, %s46
      %s48 = ssub.s32 %s42, %s44
      %s49 = sor.u32 %s47, %s48
      %p50 = scmp.eq.s32.totalorder %s49, 0
      %s52 = sadd.s32 %s51, 1
      %s53 = scalar_select %p50, %s51, %s52
      %p56 = pneg %p50
      %p57 = scmp.eq.s32.totalorder %s14, 11
      %p58 = por %p56, %p57
      %p59 = scmp.ne.s32.totalorder %s51, %s54
      %p60 = scmp.eq.s32.totalorder %s14, 0
      %p61 = por %p59, %p60
      %p62 = scmp.ne.s32.totalorder %s51, %s54
      %p63 = scmp.eq.s32.totalorder %s19, 11
      %p64 = por %p62, %p63
      %p65 = scmp.ne.s32.totalorder %s54, %s55
      %p66 = scmp.eq.s32.totalorder %s19, 0
      %p67 = por %p65, %p66
      %p68 = scmp.ne.s32.totalorder %s54, %s55
      %p69 = scmp.eq.s32.totalorder %s20, 11
      %p70 = por %p68, %p69
      %p72 = scmp.ne.s32.totalorder %s55, %s71
      %p73 = scmp.eq.s32.totalorder %s20, 0
      %p74 = por %p72, %p73
      %s75 = smul.u32 %s23, 2
      %s76 = ssub.s32 %s75, 1
      %p77 = scmp.gt.s32.totalorder %s76, 0
      %s78 = scalar_select %p77, %s76, 0
      %s79 = smul.u32 %s32, 2
      %s80 = ssub.s32 %s79, 1
      %p81 = scmp.gt.s32.totalorder %s80, 0
      %s82 = scalar_select %p81, %s80, 0
      %s83 = ssub.s32 %s21, %s40
      %s84 = ssub.s32 %s22, %s36
      %s85 = sor.u32 %s83, %s84
      %s86 = ssub.s32 %s78, %s82
      %s87 = sor.u32 %s85, %s86
      %p88 = scmp.eq.s32.totalorder %s87, 0
      %s90 = sadd.s32 %s89, 1
      %s91 = scalar_select %p88, %s89, %s90
      %p94 = pneg %p88
      %p95 = scmp.eq.s32.totalorder %s14, 11
      %p96 = por %p94, %p95
      %p97 = scmp.ne.s32.totalorder %s89, %s92
      %p98 = scmp.eq.s32.totalorder %s14, 0
      %p99 = por %p97, %p98
      %p100 = scmp.ne.s32.totalorder %s89, %s92
      %p101 = scmp.eq.s32.totalorder %s19, 11
      %p102 = por %p100, %p101
      %p103 = scmp.ne.s32.totalorder %s92, %s93
      %p104 = scmp.eq.s32.totalorder %s19, 0
      %p105 = por %p103, %p104
      %p106 = scmp.ne.s32.totalorder %s92, %s93
      %p107 = scmp.eq.s32.totalorder %s20, 11
      %p108 = por %p106, %p107
      %p110 = scmp.ne.s32.totalorder %s93, %s109
      %p111 = scmp.eq.s32.totalorder %s20, 0
      %p112 = por %p110, %p111
      %s113 = ssub.s32 %s21, %s40
      %s114 = ssub.s32 %s22, %s36
      %s115 = sor.u32 %s113, %s114
      %s116 = ssub.s32 %s23, %s32
      %s117 = sor.u32 %s115, %s116
      %p118 = scmp.eq.s32.totalorder %s117, 0
      %s120 = sadd.s32 %s119, 1
      %s121 = scalar_select %p118, %s119, %s120
      %p124 = pneg %p118
      %p125 = scmp.eq.s32.totalorder %s14, 11
      %p126 = por %p124, %p125
      %p127 = scmp.ne.s32.totalorder %s119, %s122
      %p128 = scmp.eq.s32.totalorder %s14, 0
      %p129 = por %p127, %p128
      %p130 = scmp.ne.s32.totalorder %s119, %s122
      %p131 = scmp.eq.s32.totalorder %s19, 11
      %p132 = por %p130, %p131
      %p133 = scmp.ne.s32.totalorder %s122, %s123
      %p134 = scmp.eq.s32.totalorder %s19, 0
      %p135 = por %p133, %p134
      %p136 = scmp.ne.s32.totalorder %s122, %s123
      %p137 = scmp.eq.s32.totalorder %s20, 11
      %p138 = por %p136, %p137
      %p140 = scmp.ne.s32.totalorder %s123, %s139
      %p141 = scmp.eq.s32.totalorder %s20, 0
      %p142 = por %p140, %p141
      %p143 = scmp.le.s32.totalorder 1, %s14
      %p144 = scmp.lt.s32.totalorder %s14, 13
      %p145 = pnand %p143, %p144
      %p146 = pneg %p145
      // Predicated region
      $region9: #{tpu_custom_call.1} parent=5 // pred_check
        _
      $region10: #{tpu_custom_call.1} parent=5 // pred_check_branch
        %148 = sbr.rel (%p145) target = $region12
      $region11: #{tpu_custom_call.1} parent=5 // pred_region
        %s149 = ssub.s32 %s14, 1
      $region12: #{tpu_custom_call.1} parent=5 // pred_fallthru
        _
      %p150 = scmp.lt.s32.totalorder %s14, 12
      // Predicated region
      $region13: #{tpu_custom_call.1} parent=5 // pred_check
        %p151 = pneg %p150
      $region14: #{tpu_custom_call.1} parent=5 // pred_check_branch
        %153 = sbr.rel (%p151) target = $region16
      $region15: #{tpu_custom_call.1} parent=5 // pred_region
        // Predicated region
        $region17: #{tpu_custom_call.1} parent=15 // pred_check
          %p154 = pneg %p61
        $region18: #{tpu_custom_call.1} parent=15 // pred_check_branch
          %156 = sbr.rel (%p154) target = $region20
        $region19: #{tpu_custom_call.1} parent=15 // pred_region
          %s157 = sand.u32 %s51, 1
          %s158 = scalar_lea.sflag [#allocation4], %s157
          %s159 = sand.u32 %s51, 1
          %s160 = smul.addr %s159, 16
          %s161 = scalar_lea.vmem [#allocation3], %s160
          %p162 = scmp.lt.s32.totalorder %s23, 0
          %s163 = scalar_select %p162, %s23, 0
          %s164 = smul.u32 2, %s163
          %s166 = ssub.s32 256, 256
          %167 = vsyncadd %s158, %s166
          %s168 = smul.addr %s22, 2
          %s169 = sadd.s32 %s164, %s168
          %s170 = smul.addr %s21, 6
          %s171 = sadd.s32 %s169, %s170
          %s172 = smul.addr %s171, 128
          %s173 = scalar_lea.hbm %s0, %s172
          %s174 = sshll.u32 %s161, 4
          %s175 = int_to_ptr.vmem [resolvable:$true] %s174
          %180 = dma.hbm_to_vmem [thread:$0]  %s173, 256, %s175, %s158, 128, 128, 8
        $region20: #{tpu_custom_call.1} parent=15 // pred_fallthru
          _
        // Predicated region
        $region21: #{tpu_custom_call.1} parent=15 // pred_check
          %p181 = pneg %p99
        $region22: #{tpu_custom_call.1} parent=15 // pred_check_branch
          %183 = sbr.rel (%p181) target = $region24
        $region23: #{tpu_custom_call.1} parent=15 // pred_region
          %s184 = sand.u32 %s89, 1
          %s185 = scalar_lea.sflag [#allocation6], %s184
          %s186 = sand.u32 %s89, 1
          %s187 = smul.addr %s186, 8
          %s188 = scalar_lea.vmem [#allocation5], %s187
          %s189 = smul.u32 %s23, 2
          %s190 = ssub.s32 %s189, 1
          %p191 = scmp.gt.s32.totalorder %s190, 0
          %s192 = scalar_select %p191, %s190, 0
          %s194 = ssub.s32 128, 128
          %195 = vsyncadd %s185, %s194
          %s196 = smul.addr %s22, 2
          %s197 = sadd.s32 %s192, %s196
          %s198 = smul.addr %s21, 6
          %s199 = sadd.s32 %s197, %s198
          %s200 = smul.addr %s199, 128
          %s201 = scalar_lea.hbm %s1, %s200
          %s203 = sshll.u32 %s188, 4
          %s204 = int_to_ptr.vmem [resolvable:$true] %s203
          %206 = dma.hbm_to_vmem [thread:$0]  %s201, 128, %s204, %s185
        $region24: #{tpu_custom_call.1} parent=15 // pred_fallthru
          _
      $region16: #{tpu_custom_call.1} parent=5 // pred_fallthru
        _
      %p207 = scmp.le.s32.totalorder 1, %s14
      %p208 = scmp.lt.s32.totalorder %s14, 13
      %p209 = pnand %p207, %p208
      %p210 = pneg %p209
      // Predicated region
      $region25: #{tpu_custom_call.1} parent=5 // pred_check
        _
      $region26: #{tpu_custom_call.1} parent=5 // pred_check_branch
        %212 = sbr.rel (%p209) target = $region28
      $region27: #{tpu_custom_call.1} parent=5 // pred_region
        %s213 = ssub.s32 %s14, 1
        %s214 = sand.u32 %s54, 1
        %s215 = scalar_lea.sflag [#allocation4], %s214
        %s216 = sand.u32 %s54, 1
        %s217 = smul.addr %s216, 16
        %s218 = scalar_lea.vmem [#allocation3], %s217
        // Predicated region
        $region29: #{tpu_custom_call.1} parent=27 // pred_check
          %p219 = pneg %p67
        $region30: #{tpu_custom_call.1} parent=27 // pred_check_branch
          %221 = sbr.rel (%p219) target = $region32
        $region31: #{tpu_custom_call.1} parent=27 // pred_region
          %222 = dma.done %s215, 256
        $region32: #{tpu_custom_call.1} parent=27 // pred_fallthru
          _
        %s223 = sand.u32 %s92, 1
        %s224 = scalar_lea.sflag [#allocation6], %s223
        %s225 = sand.u32 %s92, 1
        %s226 = smul.addr %s225, 8
        %s227 = scalar_lea.vmem [#allocation5], %s226
        // Predicated region
        $region33: #{tpu_custom_call.1} parent=27 // pred_check
          %p228 = pneg %p105
        $region34: #{tpu_custom_call.1} parent=27 // pred_check_branch
          %230 = sbr.rel (%p228) target = $region36
        $region35: #{tpu_custom_call.1} parent=27 // pred_region
          %231 = dma.done %s224, 128
        $region36: #{tpu_custom_call.1} parent=27 // pred_fallthru
          _
        %s232 = sand.u32 %s54, 1
        %s233 = scalar_lea.sflag [#allocation4], %s232
        %s234 = sand.u32 %s54, 1
        %s235 = smul.addr %s234, 16
        %s236 = scalar_lea.vmem [#allocation3], %s235
        %p237 = pneg %p67
        %p238 = pneg %p64
        %s239 = sand.u32 %s92, 1
        %s240 = scalar_lea.sflag [#allocation6], %s239
        %s241 = sand.u32 %s92, 1
        %s242 = smul.addr %s241, 8
        %s243 = scalar_lea.vmem [#allocation5], %s242
        %p244 = pneg %p105
        %p245 = pneg %p102
        %p246 = pneg %p135
        %p247 = pneg %p132
        %s248 = sand.u32 %s122, 1
        %s249 = sand.u32 %s122, 1
        %s250 = smul.addr %s249, 16
        %s251 = scalar_lea.vmem [#allocation7], %s250
        %p252 = scmp.lt.s32.totalorder %s26, 0
        %s253 = scalar_select %p252, %s26, 0
        %s254 = smul.u32 2, %s253
        %s255 = smul.u32 %s26, 2
        %s256 = ssub.s32 %s255, 1
        %p257 = scmp.gt.s32.totalorder %s256, 0
        %s258 = scalar_select %p257, %s256, 0
        %s259 = smul.u32 2, %s26
        %s260 = ssub.s32 3, %s259
        %p261 = scmp.lt.s32.totalorder %s260, 2
        %s262 = scalar_select %p261, %s260, 2
        %s263 = smul.u32 128, %s262
        %vm264 = vcmask 15360
        %265 = vst.msk [vmem:[#allocation2] sm:$0xff] %vm264, 0.0
        %266 = vst.msk [vmem:[#allocation2 + $0x8] sm:$0xff] %vm264, 0.0
        %vm267 = vcmask 9216
        %268 = vst.msk [vmem:[#allocation2 + $0x10] sm:$0x3] %vm267, 0.0
        %vm269 = vcmask 162960
        %270 = vst.msk [vmem:[#allocation2] sm:$0xff] %vm269, 0.0
        %271 = vst.msk [vmem:[#allocation2 + $0x8] sm:$0xff] %vm269, 0.0
        %vm272 = vcmask 156816
        %273 = vst.msk [vmem:[#allocation2 + $0x10] sm:$0x3] %vm272, 0.0
        %v274 = vld [vmem:[%s227 + $0x6] sm:$0x3]
        %276 = vrot.lane.b32.xlu0 %v274, 2
        %v277 = vpop.permute.xlu0 %276
        %vm279 = vcmask 140304
        %280 = vst.msk [vmem:[#allocation2] sm:$0x3] %vm279, %v277
        %p281 = scmp.eq.s32.totalorder %s26, 0
        // Predicated region
        $region37: #{tpu_custom_call.1} parent=27 // pred_check
          %p282 = pneg %p281
        $region38: #{tpu_custom_call.1} parent=27 // pred_check_branch
          %284 = sbr.rel (%p282) target = $region40
        $region39: #{tpu_custom_call.1} parent=27 // pred_region
          %285 = vst.msk [vmem:[#allocation2] sm:$0x3] %vm279, 0.0
        $region40: #{tpu_custom_call.1} parent=27 // pred_fallthru
          _
        %v286 = vld [vmem:[%s218] sm:$0xff]
        %v287 = vld [vmem:[%s218 + $0x8] sm:$0xff]
        %290 = vrot.lane.b32.xlu0 %v286, 2
        %v291 = vpop.permute.xlu0 %290
        %292 = vrot.lane.b32.xlu0 %v287, 2
        %v293 = vpop.permute.xlu0 %292
        %vm296 = vcmask 146448
        %297 = vst.msk [vmem:[#allocation2 + $0x2] sm:$0xff] %vm296, %v291
        %298 = vst.msk [vmem:[#allocation2 + $0xa] sm:$0xff] %vm296, %v293
        %p299 = scmp.eq.s32.totalorder %s26, 1
        // Predicated region
        $region41: #{tpu_custom_call.1} parent=27 // pred_check
          %p300 = pneg %p299
        $region42: #{tpu_custom_call.1} parent=27 // pred_check_branch
          %302 = sbr.rel (%p300) target = $region44
        $region43: #{tpu_custom_call.1} parent=27 // pred_region
          %303 = vst.msk [vmem:[#allocation2 + $0x2] sm:$0x3] %vm279, 0.0
        $region44: #{tpu_custom_call.1} parent=27 // pred_fallthru
          _
        %v304 = vld [vmem:[#allocation2 + $0x2] sm:$0xff]
        %v305 = vld [vmem:[#allocation2 + $0xa] sm:$0xff]
        %v306 = vld [vmem:[#allocation2] sm:$0xff]
        %v307 = vld [vmem:[#allocation2 + $0x8] sm:$0xff]
        %v308 = vld [vmem:[#allocation2 + $0x1] sm:$0xff]
        %v309 = vld [vmem:[#allocation2 + $0x9] sm:$0xff]
        %v310 = vsub.f32 %v304, %v306
        %v311 = vsub.f32 %v305, %v307
        %314 = vrot.lane.b32.xlu0 %v308, 2
        %v315 = vpop.permute.xlu0 %314
        %316 = vrot.lane.b32.xlu0 %v309, 2
        %v317 = vpop.permute.xlu0 %316
        %v320 = vsub.f32 %v308, %v315
        %v321 = vsub.f32 %v309, %v317
        %v322 = vmul.f32 %v310, %v310
        %v323 = vmul.f32 %v311, %v311
        %v324 = vmul.f32 %v320, %v320
        %v325 = vmul.f32 %v321, %v321
        %328 = vrot.lane.b32.xlu0 %v324, 127
        %v329 = vpop.permute.xlu0 %328
        %330 = vrot.lane.b32.xlu0 %v325, 127
        %v331 = vpop.permute.xlu0 %330
        %v334 = vadd.f32 %v322, %v329
        %v335 = vadd.f32 %v323, %v331
        %v336 = vadd.f32 %v334, 1e-06
        %v337 = vadd.f32 %v335, 1e-06
        %v338 = vrsqrt.pop %v336
        %v339 = vmul.f32 %v336, %v338
        %vm340 = vcmp.eq.f32.partialorder %v336, inf
        %v341 = vsel %vm340, %v336, %v339
        %vm342 = vcmp.eq.f32.partialorder %v336, 0.0
        %v343 = vand.u32 %v336, 2147483648
        %v344 = vsel %vm342, %v343, %v341
        %v345 = vrsqrt.pop %v337
        %v346 = vmul.f32 %v337, %v345
        %vm347 = vcmp.eq.f32.partialorder %v337, inf
        %v348 = vsel %vm347, %v337, %v346
        %vm349 = vcmp.eq.f32.partialorder %v337, 0.0
        %v350 = vand.u32 %v337, 2147483648
        %v351 = vsel %vm349, %v350, %v348
        %354 = vrot.lane.b32.xlu0 %v344, 127
        %v355 = vpop.permute.xlu0 %354
        %356 = vrot.lane.b32.xlu0 %v351, 127
        %v357 = vpop.permute.xlu0 %356
        %vm360 = vcmask 146432
        %361 = vst.msk [vmem:[%s251] sm:$0xff] %vm360, %v355
        %362 = vst.msk [vmem:[%s251 + $0x8] sm:$0xff] %vm360, %v357
        %s363 = sand.u32 %s122, 1
        %s364 = sand.u32 %s122, 1
        %s365 = smul.addr %s364, 16
        %s366 = scalar_lea.vmem [#allocation7], %s365
        // Predicated region
        $region45: #{tpu_custom_call.1} parent=27 // pred_check
          %p367 = pneg %p132
        $region46: #{tpu_custom_call.1} parent=27 // pred_check_branch
          %369 = sbr.rel (%p367) target = $region48
        $region47: #{tpu_custom_call.1} parent=27 // pred_region
          %s370 = smul.u32 2, %s26
          %s371 = ssub.s32 3, %s370
          %p372 = scmp.lt.s32.totalorder %s371, 2
          %s373 = scalar_select %p372, %s371, 2
          %s374 = smul.u32 128, %s373
          %p375 = scmp.ne.s32.totalorder 0, %s374
          %s376 = smul.addr %s25, 3
          %s377 = sadd.s32 %s370, %s376
          %s378 = smul.addr %s24, 9
          %s379 = sadd.s32 %s377, %s378
          %s380 = smul.addr %s379, 8
          %s381 = scalar_lea.vmem %s2, %s380
          // Predicated region
          $region49: #{tpu_custom_call.1} parent=47 // pred_check
            %p382 = pneg %p375
          $region50: #{tpu_custom_call.1} parent=47 // pred_check_branch
            %384 = sbr.rel (%p382) target = $region52
          $region51: #{tpu_custom_call.1} parent=47 // pred_region
            // Predicated region
            $region53: #{tpu_custom_call.1} parent=51 // pred_check
              _
            $region54: #{tpu_custom_call.1} parent=51 // pred_check_branch
              %386 = sbr.rel (0) target = $region56
            $region55: #{tpu_custom_call.1} parent=51 // pred_region
              // Predicated region
              $region75: #{tpu_custom_call.1} parent=55 // pred_check
                _
              $region76: #{tpu_custom_call.1} parent=55 // pred_check_branch
                %437 = sbr.rel (0) target = $region78
              $region77: #{tpu_custom_call.1} parent=55 // pred_region
                %s438 = sshrl.u32 %s373, 1
                // While loop
                $region79: #{tpu_custom_call.1} parent=77 // loop_pre_header
                  _
                $region80: #{tpu_custom_call.1} parent=77 // loop_header
                  %s440 = sphi 0, %s442
                  %p441 = scmp.ge.s32.totalorder %s440, %s438
                  %s445 = sphi 0, %s454
                  %s446 = sphi %s366, %s457
                  %s447 = sphi %s381, %s458
                $region81: #{tpu_custom_call.1} parent=77 // loop_header_branch
                  %444 = sbr.rel (%p441) target = $region85
                $region82: #{tpu_custom_call.1} parent=77 // loop_body
                  %v448 = vld [vmem:[%s446] sm:$0xff]
                  %449 = vst [vmem:[%s447] sm:$0xff] %v448
                  %v450 = vld [vmem:[%s446 + $0x8] sm:$0xff]
                  %451 = vst [vmem:[%s447 + $0x8] sm:$0xff] %v450
                  %s452 = sadd.s32 1, %s445
                  %p453 = scmp.ge.s32.totalorder %s452, %s438
                  %s454 = scalar_select %p453, 0, %s452
                  %s455 = smul.u32 %s454, 16
                  %s456 = smul.u32 %s454, 16
                  %s457 = scalar_lea.vmem %s366, %s455 [#allocation7]
                  %s458 = scalar_lea.vmem %s381, %s456
                $region83: #{tpu_custom_call.1} parent=77 // loop_footer
                  %s442 = sadd.s32 %s440, 1
                $region84: #{tpu_custom_call.1} parent=77 // loop_footer_branch
                  %439 = sbr.rel target = $region80
                $region85: #{tpu_custom_call.1} parent=77 // loop_exit
                  _
                %s459 = sshrl.u32 %s373, 1
                %s460 = sand.u32 %s373, 1
                %s461 = smul.u32 %s459, 2
                %s462 = smul.u32 8, %s461
                %s463 = scalar_lea.vmem %s366, %s462 [#allocation7]
                %s464 = smul.u32 8, %s461
                %s465 = scalar_lea.vmem %s381, %s464
                // While loop
                $region86: #{tpu_custom_call.1} parent=77 // loop_pre_header
                  _
                $region87: #{tpu_custom_call.1} parent=77 // loop_header
                  %s467 = sphi 0, %s469
                  %p468 = scmp.ge.s32.totalorder %s467, %s460
                  %s472 = sphi 0, %s479
                  %s473 = sphi %s463, %s482
                  %s474 = sphi %s465, %s483
                $region88: #{tpu_custom_call.1} parent=77 // loop_header_branch
                  %471 = sbr.rel (%p468) target = $region92
                $region89: #{tpu_custom_call.1} parent=77 // loop_body
                  %v475 = vld [vmem:[%s473] sm:$0xff]
                  %476 = vst [vmem:[%s474] sm:$0xff] %v475
                  %s477 = sadd.s32 1, %s472
                  %p478 = scmp.ge.s32.totalorder %s477, %s460
                  %s479 = scalar_select %p478, 0, %s477
                  %s480 = smul.u32 %s479, 8
                  %s481 = smul.u32 %s479, 8
                  %s482 = scalar_lea.vmem %s463, %s480 [#allocation7]
                  %s483 = scalar_lea.vmem %s465, %s481
                $region90: #{tpu_custom_call.1} parent=77 // loop_footer
                  %s469 = sadd.s32 %s467, 1
                $region91: #{tpu_custom_call.1} parent=77 // loop_footer_branch
                  %466 = sbr.rel target = $region87
                $region92: #{tpu_custom_call.1} parent=77 // loop_exit
                  _
              $region78: #{tpu_custom_call.1} parent=55 // pred_fallthru
                _
              // Predicated region
              $region93: #{tpu_custom_call.1} parent=55 // pred_check
                _
              $region94: #{tpu_custom_call.1} parent=55 // pred_check_branch
                %485 = sbr.rel target = $region96
              $region95: #{tpu_custom_call.1} parent=55 // pred_region
                _
              $region96: #{tpu_custom_call.1} parent=55 // pred_fallthru
                _
            $region56: #{tpu_custom_call.1} parent=51 // pred_fallthru
              _
            // Predicated region
            $region57: #{tpu_custom_call.1} parent=51 // pred_check
              _
            $region58: #{tpu_custom_call.1} parent=51 // pred_check_branch
              %388 = sbr.rel target = $region60
            $region59: #{tpu_custom_call.1} parent=51 // pred_region
              %s390 = sshrl.u32 %s373, 1
              // While loop
              $region61: #{tpu_custom_call.1} parent=59 // loop_pre_header
                _
              $region62: #{tpu_custom_call.1} parent=59 // loop_header
                %s392 = sphi 0, %s394
                %p393 = scmp.ge.s32.totalorder %s392, %s390
                %s397 = sphi 0, %s406
                %s398 = sphi %s366, %s409
                %s399 = sphi %s381, %s410
              $region63: #{tpu_custom_call.1} parent=59 // loop_header_branch
                %396 = sbr.rel (%p393) target = $region67
              $region64: #{tpu_custom_call.1} parent=59 // loop_body
                %v400 = vld [vmem:[%s398] sm:$0xff]
                %401 = vst [vmem:[%s399] sm:$0xff] %v400
                %v402 = vld [vmem:[%s398 + $0x8] sm:$0xff]
                %403 = vst [vmem:[%s399 + $0x8] sm:$0xff] %v402
                %s404 = sadd.s32 1, %s397
                %p405 = scmp.ge.s32.totalorder %s404, %s390
                %s406 = scalar_select %p405, 0, %s404
                %s407 = smul.u32 %s406, 16
                %s408 = smul.u32 %s406, 16
                %s409 = scalar_lea.vmem %s366, %s407 [#allocation7]
                %s410 = scalar_lea.vmem %s381, %s408
              $region65: #{tpu_custom_call.1} parent=59 // loop_footer
                %s394 = sadd.s32 %s392, 1
              $region66: #{tpu_custom_call.1} parent=59 // loop_footer_branch
                %391 = sbr.rel target = $region62
              $region67: #{tpu_custom_call.1} parent=59 // loop_exit
                _
              %s411 = sshrl.u32 %s373, 1
              %s412 = sand.u32 %s373, 1
              %s413 = smul.u32 %s411, 2
              %s414 = smul.u32 8, %s413
              %s415 = scalar_lea.vmem %s366, %s414 [#allocation7]
              %s416 = smul.u32 8, %s413
              %s417 = scalar_lea.vmem %s381, %s416
              // While loop
              $region68: #{tpu_custom_call.1} parent=59 // loop_pre_header
                _
              $region69: #{tpu_custom_call.1} parent=59 // loop_header
                %s419 = sphi 0, %s421
                %p420 = scmp.ge.s32.totalorder %s419, %s412
                %s424 = sphi 0, %s431
                %s425 = sphi %s415, %s434
                %s426 = sphi %s417, %s435
              $region70: #{tpu_custom_call.1} parent=59 // loop_header_branch
                %423 = sbr.rel (%p420) target = $region74
              $region71: #{tpu_custom_call.1} parent=59 // loop_body
                %v427 = vld [vmem:[%s425] sm:$0xff]
                %428 = vst [vmem:[%s426] sm:$0xff] %v427
                %s429 = sadd.s32 1, %s424
                %p430 = scmp.ge.s32.totalorder %s429, %s412
                %s431 = scalar_select %p430, 0, %s429
                %s432 = smul.u32 %s431, 8
                %s433 = smul.u32 %s431, 8
                %s434 = scalar_lea.vmem %s415, %s432 [#allocation7]
                %s435 = scalar_lea.vmem %s417, %s433
              $region72: #{tpu_custom_call.1} parent=59 // loop_footer
                %s421 = sadd.s32 %s419, 1
              $region73: #{tpu_custom_call.1} parent=59 // loop_footer_branch
                %418 = sbr.rel target = $region69
              $region74: #{tpu_custom_call.1} parent=59 // loop_exit
                _
            $region60: #{tpu_custom_call.1} parent=51 // pred_fallthru
              _
          $region52: #{tpu_custom_call.1} parent=47 // pred_fallthru
            _
          %486 = vnop
        $region48: #{tpu_custom_call.1} parent=27 // pred_fallthru
          _
      $region28: #{tpu_custom_call.1} parent=5 // pred_fallthru
        _
      %p487 = scmp.le.s32.totalorder 2, %s14
      // Predicated region
      $region97: #{tpu_custom_call.1} parent=5 // pred_check
        %p488 = pneg %p487
      $region98: #{tpu_custom_call.1} parent=5 // pred_check_branch
        %490 = sbr.rel (%p488) target = $region100
      $region99: #{tpu_custom_call.1} parent=5 // pred_region
        %s491 = ssub.s32 %s14, 2
        // Predicated region
        $region101: #{tpu_custom_call.1} parent=99 // pred_check
          %p492 = pneg %p138
        $region102: #{tpu_custom_call.1} parent=99 // pred_check_branch
          %494 = sbr.rel (%p492) target = $region104
        $region103: #{tpu_custom_call.1} parent=99 // pred_region
          %s495 = sand.u32 %s123, 1
          %s496 = sand.u32 %s123, 1
          %s497 = smul.addr %s496, 16
          %s498 = scalar_lea.vmem [#allocation7], %s497
        $region104: #{tpu_custom_call.1} parent=99 // pred_fallthru
          _
      $region100: #{tpu_custom_call.1} parent=5 // pred_fallthru
        _
    $region6: #{tpu_custom_call.1} parent=1 // loop_footer
      %s18 = sadd.s32 1, %s14
    $region7: #{tpu_custom_call.1} parent=1 // loop_footer_branch
      %13 = sbr.rel target = $region3
    $region8: #{tpu_custom_call.1} parent=1 // loop_exit
      _
    %499 = vsyncpa [#allocation4], 1
    %s500 = scalar_lea.sflag [#allocation4], 1
    %501 = vsyncpa %s500, 1
    %502 = vsyncpa [#allocation6], 1
    %s503 = scalar_lea.sflag [#allocation6], 1
    %504 = vsyncpa %s503, 1

</llo_original>
